<compile_context>
chip_gen: v7x
topology: tpu7x:2x2x1
jax: 0.10.0
libtpu: 0.0.40
codegen_flags: <defaults>
</compile_context>

<pallas_src>
from functools import partial

import jax
import jax.numpy as jnp
from jax.experimental import pallas as pl
from jax.experimental.pallas import tpu as pltpu


def _merge_pw_kernel(y_ref, w_ref, scale_ref, shift_ref, o_ref):
    # y_ref: (1, hidden, tm) bf16 | w_ref: (out_dim, hidden) bf16
    # scale_ref / shift_ref: (out_dim, 1) f32 | o_ref: (1, out_dim, tm) out_dtype
    acc = jnp.dot(w_ref[...], y_ref[0], preferred_element_type=jnp.float32)  # (out_dim, tm)
    z = acc * scale_ref[...] + shift_ref[...]       # f32 BN scale/shift on f32 accumulator
    # SiLU = z * sigmoid(z); exp + approx reciprocal -> EUP slot, VALU stays free.
    sig = pl.reciprocal(1.0 + jnp.exp(-z), approx=True)
    o_ref[0] = (z * sig).astype(o_ref.dtype)


@partial(jax.jit, static_argnames=("eps", "tm", "out_dtype"))
def vision_clue_merge(x, conv_w, conv_b, bn_gamma, bn_beta, bn_mean, bn_var,
                      eps=1e-5, tm=2048, out_dtype=jnp.bfloat16):
    """x: (B, C, H, W) NCHW, conv_w: (out_dim, 4*C, 1, 1), conv_b: (out_dim,)."""
    B, C, H, W = x.shape
    Ho, Wo = H // 2, W // 2
    hidden = 4 * C
    out_dim = conv_w.shape[0]
    HoWo = Ho * Wo
    out_isz = jnp.dtype(out_dtype).itemsize

    # Space-to-depth, channel-major, ONE fused relayout pass (transpose + bf16 cast):
    # (B, C, Ho, 2, Wo, 2) -> (B, dh, dw, C, Ho, Wo) -> (B, 4C, Ho*Wo),
    # kernel channel index = dh*2C + dw*C + c.
    y = jnp.transpose(x.reshape(B, C, Ho, 2, Wo, 2), (0, 3, 5, 1, 2, 4))
    y = y.reshape(B, hidden, HoWo).astype(jnp.bfloat16)

    # Permute the 1x1-conv weight columns from torch.cat's ((dh,dw) in
    # [(0,0),(1,0),(0,1),(1,1)]) channel order to the kernel's (dh, dw, c) order.
    hp = jnp.arange(hidden)
    dh, dw, c = hp // (2 * C), (hp // C) % 2, hp % C
    perm = (dw * 2 + dh) * C + c
    w = conv_w.reshape(out_dim, hidden).astype(jnp.bfloat16)[:, perm]

    # Eval-mode BatchNorm + conv bias folded into an f32 per-channel scale/shift
    # (applied to the f32 accumulator in-kernel; weight itself stays unscaled bf16).
    # TODO(synk): PyTorch default (training-mode) BN uses batch statistics; this
    # reproduces eval-mode BN with running stats.
    s = (bn_gamma / jnp.sqrt(bn_var + eps)).astype(jnp.float32)
    scale = s.reshape(out_dim, 1)
    shift = ((conv_b - bn_mean) * s + bn_beta).reshape(out_dim, 1).astype(jnp.float32)

    # Spatial (lane) tile: one full-extent tile if it fits, else a multiple of 128
    # (unmasked lane-dense loads/stores).  No padding: the last tile may overhang;
    # Pallas pads the OOB read and masks the OOB write (op is pointwise per lane).
    if HoWo <= tm:
        tm_eff, n_tiles = HoWo, 1
    else:
        tm_eff = max(128, (tm // 128) * 128)
        per_lane_bytes = 2 * (2 * hidden + out_isz * out_dim)   # double-buffered in + out
        budget = 24 * 2**20 - 2 * hidden * out_dim              # headroom for the weight tile
        while tm_eff > 128 and tm_eff * per_lane_bytes > budget:
            tm_eff = max(128, ((tm_eff // 2) // 128) * 128)
        n_tiles = pl.cdiv(HoWo, tm_eff)

    bytes_accessed = (B * hidden * HoWo * 2          # y (bf16)
                      + out_dim * hidden * 2         # weight (bf16)
                      + 2 * out_dim * 4              # scale + shift (f32)
                      + B * out_dim * HoWo * out_isz)  # output

    out = pl.pallas_call(
        _merge_pw_kernel,
        out_shape=jax.ShapeDtypeStruct((B, out_dim, HoWo), out_dtype),
        grid_spec=pltpu.PrefetchScalarGridSpec(
            num_scalar_prefetch=0,
            grid=(B, n_tiles),
            in_specs=[
                pl.BlockSpec((1, hidden, tm_eff), lambda b, i: (b, 0, i)),
                pl.BlockSpec((out_dim, hidden), lambda b, i: (0, 0)),
                pl.BlockSpec((out_dim, 1), lambda b, i: (0, 0)),
                pl.BlockSpec((out_dim, 1), lambda b, i: (0, 0)),
            ],
            out_specs=pl.BlockSpec((1, out_dim, tm_eff), lambda b, i: (b, 0, i)),
        ),
        compiler_params=pltpu.CompilerParams(
            dimension_semantics=("parallel", "parallel"),
            vmem_limit_bytes=32 * 1024 * 1024),
        cost_estimate=pl.CostEstimate(
            flops=2 * B * out_dim * hidden * HoWo,
            transcendentals=B * out_dim * HoWo,
            bytes_accessed=bytes_accessed),
    )(y, w, scale, shift)

    # Pure reshape: the kernel already produced NC(HW) — no output transpose needed.
    return out.reshape(B, out_dim, Ho, Wo)


def _reference(x, conv_w, conv_b, bn_gamma, bn_beta, bn_mean, bn_var, eps=1e-5):
    # Straight f32 re-implementation of the PyTorch module (eval-mode BN).
    y = jnp.concatenate([
        x[..., ::2, ::2], x[..., 1::2, ::2],
        x[..., ::2, 1::2], x[..., 1::2, 1::2]], axis=1).astype(jnp.float32)
    w = conv_w.reshape(conv_w.shape[0], -1).astype(jnp.float32)  # (out_dim, hidden)
    cv = jnp.einsum('bchw,oc->bohw', y, w) + conv_b[None, :, None, None]
    s = (bn_gamma / jnp.sqrt(bn_var + eps))[None, :, None, None]
    t = (bn_beta - bn_mean * bn_gamma / jnp.sqrt(bn_var + eps))[None, :, None, None]
    z = cv * s + t
    return z * jax.nn.sigmoid(z)


if __name__ == "__main__":
    # Module config: dim=4 -> hidden=16, out_dim=8; input (B, dim, H, W) = (2, 4, 16, 16)
    dim, out_dim = 4, 8
    hidden = 4 * dim
    B, H, W = 2, 16, 16

    key = jax.random.PRNGKey(0)
    kx, kw, kb = jax.random.split(key, 3)

    x = jax.random.normal(kx, (B, dim, H, W), dtype=jnp.float32)

    # Shapes from nn.Conv2d(hidden, out_dim, 1) + nn.BatchNorm2d(out_dim)
    conv_w = jax.random.normal(kw, (out_dim, hidden, 1, 1), dtype=jnp.float32) * 0.1
    conv_b = jax.random.normal(kb, (out_dim,), dtype=jnp.float32) * 0.1
    bn_gamma = jnp.ones((out_dim,), jnp.float32)
    bn_beta = jnp.zeros((out_dim,), jnp.float32)
    bn_mean = jnp.zeros((out_dim,), jnp.float32)
    bn_var = jnp.ones((out_dim,), jnp.float32)

    out = vision_clue_merge(x, conv_w, conv_b, bn_gamma, bn_beta, bn_mean, bn_var)
    out = jax.block_until_ready(out)

    ref = _reference(x, conv_w, conv_b, bn_gamma, bn_beta, bn_mean, bn_var)
    assert out.shape == (B, out_dim, H // 2, W // 2), out.shape
    out_f32 = out.astype(jnp.float32)
    # bf16 activations/weights/output in the kernel vs f32 reference -> bf16-level tolerance.
    max_err = float(jnp.max(jnp.abs(out_f32 - ref)))
    assert jnp.allclose(out_f32, ref, atol=5e-2, rtol=5e-2), max_err

    print("KERNEL_OK")
</pallas_src>

<mosaic_0001>
module attributes {stable_mosaic.version = 11 : i64} {
  func.func @_merge_pw_kernel(%arg0: i32, %arg1: i32, %arg2: memref<1x16x64xbf16, #tpu.memory_space<vmem>>, %arg3: memref<8x16xbf16, #tpu.memory_space<vmem>>, %arg4: memref<8x1xf32, #tpu.memory_space<vmem>>, %arg5: memref<8x1xf32, #tpu.memory_space<vmem>>, %arg6: memref<1x8x64xbf16, #tpu.memory_space<vmem>>) attributes {dimension_semantics = [#tpu.dimension_semantics<parallel>, #tpu.dimension_semantics<parallel>], iteration_bounds = array<i64: 2, 1>, scalar_prefetch = 0 : i64, scratch_operands = 0 : i64, tpu.core_type = #tpu.core_type<tc>, window_params = [{transform_indices = @transform_0, window_bounds = array<i64: 1, 16, 64>}, {pipeline_mode = #tpu.pipeline_mode<synchronous>, transform_indices = @transform_1, window_bounds = array<i64: 8, 16>}, {pipeline_mode = #tpu.pipeline_mode<synchronous>, transform_indices = @transform_2, window_bounds = array<i64: 8, 1>}, {pipeline_mode = #tpu.pipeline_mode<synchronous>, transform_indices = @transform_3, window_bounds = array<i64: 8, 1>}, {transform_indices = @transform_4, window_bounds = array<i64: 1, 8, 64>}]} {
    %c0 = arith.constant 0 : index
    %c0_0 = arith.constant 0 : index
    %0 = vector.load %arg3[%c0, %c0_0] : memref<8x16xbf16, #tpu.memory_space<vmem>>, vector<8x16xbf16>
    %c0_1 = arith.constant 0 : index
    %c0_2 = arith.constant 0 : index
    %c0_3 = arith.constant 0 : index
    %1 = vector.load %arg2[%c0_1, %c0_2, %c0_3] : memref<1x16x64xbf16, #tpu.memory_space<vmem>>, vector<1x16x64xbf16>
    %2 = vector.shape_cast %1 : vector<1x16x64xbf16> to vector<16x64xbf16>
    %cst = arith.constant dense<0.000000e+00> : vector<8x64xf32>
    %3 = tpu.matmul %0, %2, %cst {dimension_numbers = #tpu.dot_dimension_numbers<[1], [0], [0], [1], [0, 0, 1, 1], [], []>} : vector<8x16xbf16>, vector<16x64xbf16>, vector<8x64xf32> -> vector<8x64xf32>
    %c0_4 = arith.constant 0 : index
    %c0_5 = arith.constant 0 : index
    %4 = vector.load %arg4[%c0_4, %c0_5] : memref<8x1xf32, #tpu.memory_space<vmem>>, vector<8x1xf32>
    %5 = vector.broadcast %4 : vector<8x1xf32> to vector<8x64xf32>
    %6 = arith.mulf %3, %5 : vector<8x64xf32>
    %c0_6 = arith.constant 0 : index
    %c0_7 = arith.constant 0 : index
    %7 = vector.load %arg5[%c0_6, %c0_7] : memref<8x1xf32, #tpu.memory_space<vmem>>, vector<8x1xf32>
    %8 = vector.broadcast %7 : vector<8x1xf32> to vector<8x64xf32>
    %9 = arith.addf %6, %8 : vector<8x64xf32>
    %cst_8 = arith.constant 0.000000e+00 : f32
    %10 = vector.broadcast %cst_8 : f32 to vector<8x64xf32>
    %11 = arith.subf %10, %9 : vector<8x64xf32>
    %12 = math.exp %11 : vector<8x64xf32>
    %cst_9 = arith.constant 1.000000e+00 : f32
    %13 = vector.broadcast %cst_9 : f32 to vector<8x64xf32>
    %14 = arith.addf %13, %12 : vector<8x64xf32>
    %15 = tpu.reciprocal %14 {approx = true} : vector<8x64xf32> -> vector<8x64xf32>
    %16 = arith.mulf %9, %15 : vector<8x64xf32>
    %17 = arith.truncf %16 : vector<8x64xf32> to vector<8x64xbf16>
    %c0_10 = arith.constant 0 : index
    %c0_11 = arith.constant 0 : index
    %c0_12 = arith.constant 0 : index
    %18 = vector.load %arg6[%c0_10, %c0_11, %c0_12] : memref<1x8x64xbf16, #tpu.memory_space<vmem>>, vector<1x8x64xbf16>
    %19 = vector.shape_cast %18 : vector<1x8x64xbf16> to vector<8x64xbf16>
    %20 = vector.shape_cast %17 : vector<8x64xbf16> to vector<1x8x64xbf16>
    tpu.vector_store %arg6[%c0_10, %c0_11, %c0_12], %20 {strides = array<i32>} : memref<1x8x64xbf16, #tpu.memory_space<vmem>>, vector<1x8x64xbf16>,
    return
  }
  func.func @transform_0(%arg0: i32, %arg1: i32) -> (i32, i32, i32) {
    %c0_i32 = arith.constant 0 : i32
    %c0_i32_0 = arith.constant 0 : i32
    return %arg0, %c0_i32, %arg1 : i32, i32, i32
  }
  func.func @transform_1(%arg0: i32, %arg1: i32) -> (i32, i32) {
    %c0_i32 = arith.constant 0 : i32
    %c0_i32_0 = arith.constant 0 : i32
    %c0_i32_1 = arith.constant 0 : i32
    return %c0_i32, %c0_i32_0 : i32, i32
  }
  func.func @transform_2(%arg0: i32, %arg1: i32) -> (i32, i32) {
    %c0_i32 = arith.constant 0 : i32
    %c0_i32_0 = arith.constant 0 : i32
    %c0_i32_1 = arith.constant 0 : i32
    return %c0_i32, %c0_i32_0 : i32, i32
  }
  func.func @transform_3(%arg0: i32, %arg1: i32) -> (i32, i32) {
    %c0_i32 = arith.constant 0 : i32
    %c0_i32_0 = arith.constant 0 : i32
    %c0_i32_1 = arith.constant 0 : i32
    return %c0_i32, %c0_i32_0 : i32, i32
  }
  func.func @transform_4(%arg0: i32, %arg1: i32) -> (i32, i32, i32) {
    %c0_i32 = arith.constant 0 : i32
    %c0_i32_0 = arith.constant 0 : i32
    return %arg0, %c0_i32, %arg1 : i32, i32, i32
  }
}

</mosaic_0001>

<llo_original>
// kernel: vision_clue_merge.1
$region0: #{vision_clue_merge.1}
  #allocation0 [shape = 'u32[]', space=smem, size = 0x4, offset = 0x4, fixed_abs, tag = 'smem constant byte address 0x4 - core index']
  #allocation1 [shape = 'u32[144,128]{1,0:T(1,128)}', space=vmem, size = 0x12000, scoped, tag = 'internal scratch']
  %s0 = inlined_call_operand.vmem [shape: bf16[2,16,64], index: 0, kind: input, shape index: {}]
  %s1 = inlined_call_operand.vmem [shape: bf16[8,16], index: 1, kind: input, shape index: {}]
  %s2 = inlined_call_operand.vmem [shape: f32[8,1], index: 2, kind: input, shape index: {}]
  %s3 = inlined_call_operand.vmem [shape: f32[8,1], index: 3, kind: input, shape index: {}]
  %s4 = inlined_call_operand.vmem [shape: bf16[2,8,64], index: 4, kind: output, shape index: {}]
  %s5 = sld [smem:[#allocation0]]
  $region49: #{vision_clue_merge.1} parent=0
    _
  %s7 = ssub.s32 1, %s5
  %s8 = scalar_select 0, %s7, %s5
  loop: start=0, step=1, limit=4
  $region2: #{vision_clue_merge.1} parent=0 // loop_pre_header
    _
  $region3: #{vision_clue_merge.1} parent=0 // loop_header
    %s10 = sphi 0, %s14
    %p11 = scmp.ge.s32.totalorder %s10, 4
    %s17 = sphi 0, %s29
    %s18 = sphi 0, %s25
    %s19 = sphi 0, %s17
    %s20 = sphi 0, %s18
    %s21 = sphi 0, %s19
    %s22 = sphi 0, %s20
    %s34 = sphi 0, %s36
    %s37 = sphi 0, %s34
    %s38 = sphi 0, %s37
    %s54 = sphi 0, %s38
    %s58 = sphi 0, %s58
    %s60 = sphi 0, %s58
    %s61 = sphi 0, %s60
    %s75 = sphi 0, %s61
    %s79 = sphi 0, %s79
    %s81 = sphi 0, %s79
    %s82 = sphi 0, %s81
    %s96 = sphi 0, %s82
    %s100 = sphi 0, %s100
    %s102 = sphi 0, %s100
    %s103 = sphi 0, %s102
    %s117 = sphi 0, %s103
    %s125 = sphi 0, %s127
    %s128 = sphi 0, %s125
    %s129 = sphi 0, %s128
    %s145 = sphi 0, %s129
  $region4: #{vision_clue_merge.1} parent=0 // loop_header_branch
    %13 = sbr.rel (%p11) target = $region8
  $region5: #{vision_clue_merge.1} parent=0 // loop_body
    %s15 = ssub.s32 %s10, 1
    %s16 = ssub.s32 %s10, 2
    %s23 = sadd.s32 1, %s18
    %p24 = scmp.ge.s32.totalorder %s23, 1
    %s25 = scalar_select %p24, 0, %s23
    %s26 = sadd.s32 1, %s17
    %s27 = scalar_select %p24, %s26, %s17
    %p28 = scmp.ge.s32.totalorder %s27, 2
    %s29 = scalar_select %p28, 0, %s27
    %s30 = ssub.s32 %s17, %s29
    %s31 = ssub.s32 %s18, %s25
    %s32 = sor.u32 %s30, %s31
    %p33 = scmp.eq.s32.totalorder %s32, 0
    %s35 = sadd.s32 %s34, 1
    %s36 = scalar_select %p33, %s34, %s35
    %p39 = pneg %p33
    %p40 = scmp.eq.s32.totalorder %s10, 1
    %p41 = por %p39, %p40
    %p42 = scmp.ne.s32.totalorder %s34, %s37
    %p43 = scmp.eq.s32.totalorder %s10, 0
    %p44 = por %p42, %p43
    %p45 = scmp.ne.s32.totalorder %s34, %s37
    %p46 = scmp.eq.s32.totalorder %s15, 1
    %p47 = por %p45, %p46
    %p48 = scmp.ne.s32.totalorder %s37, %s38
    %p49 = scmp.eq.s32.totalorder %s15, 0
    %p50 = por %p48, %p49
    %p51 = scmp.ne.s32.totalorder %s37, %s38
    %p52 = scmp.eq.s32.totalorder %s16, 1
    %p53 = por %p51, %p52
    %p55 = scmp.ne.s32.totalorder %s38, %s54
    %p56 = scmp.eq.s32.totalorder %s16, 0
    %p57 = por %p55, %p56
    %s59 = sadd.s32 %s58, 1
    %p62 = scmp.eq.s32.totalorder %s10, 1
    %p63 = scmp.ne.s32.totalorder %s58, %s60
    %p64 = scmp.eq.s32.totalorder %s10, 0
    %p65 = por %p63, %p64
    %p66 = scmp.ne.s32.totalorder %s58, %s60
    %p67 = scmp.eq.s32.totalorder %s15, 1
    %p68 = por %p66, %p67
    %p69 = scmp.ne.s32.totalorder %s60, %s61
    %p70 = scmp.eq.s32.totalorder %s15, 0
    %p71 = por %p69, %p70
    %p72 = scmp.ne.s32.totalorder %s60, %s61
    %p73 = scmp.eq.s32.totalorder %s16, 1
    %p74 = por %p72, %p73
    %p76 = scmp.ne.s32.totalorder %s61, %s75
    %p77 = scmp.eq.s32.totalorder %s16, 0
    %p78 = por %p76, %p77
    %s80 = sadd.s32 %s79, 1
    %p83 = scmp.eq.s32.totalorder %s10, 1
    %p84 = scmp.ne.s32.totalorder %s79, %s81
    %p85 = scmp.eq.s32.totalorder %s10, 0
    %p86 = por %p84, %p85
    %p87 = scmp.ne.s32.totalorder %s79, %s81
    %p88 = scmp.eq.s32.totalorder %s15, 1
    %p89 = por %p87, %p88
    %p90 = scmp.ne.s32.totalorder %s81, %s82
    %p91 = scmp.eq.s32.totalorder %s15, 0
    %p92 = por %p90, %p91
    %p93 = scmp.ne.s32.totalorder %s81, %s82
    %p94 = scmp.eq.s32.totalorder %s16, 1
    %p95 = por %p93, %p94
    %p97 = scmp.ne.s32.totalorder %s82, %s96
    %p98 = scmp.eq.s32.totalorder %s16, 0
    %p99 = por %p97, %p98
    %s101 = sadd.s32 %s100, 1
    %p104 = scmp.eq.s32.totalorder %s10, 1
    %p105 = scmp.ne.s32.totalorder %s100, %s102
    %p106 = scmp.eq.s32.totalorder %s10, 0
    %p107 = por %p105, %p106
    %p108 = scmp.ne.s32.totalorder %s100, %s102
    %p109 = scmp.eq.s32.totalorder %s15, 1
    %p110 = por %p108, %p109
    %p111 = scmp.ne.s32.totalorder %s102, %s103
    %p112 = scmp.eq.s32.totalorder %s15, 0
    %p113 = por %p111, %p112
    %p114 = scmp.ne.s32.totalorder %s102, %s103
    %p115 = scmp.eq.s32.totalorder %s16, 1
    %p116 = por %p114, %p115
    %p118 = scmp.ne.s32.totalorder %s103, %s117
    %p119 = scmp.eq.s32.totalorder %s16, 0
    %p120 = por %p118, %p119
    %s121 = ssub.s32 %s17, %s29
    %s122 = ssub.s32 %s18, %s25
    %s123 = sor.u32 %s121, %s122
    %p124 = scmp.eq.s32.totalorder %s123, 0
    %s126 = sadd.s32 %s125, 1
    %s127 = scalar_select %p124, %s125, %s126
    %p130 = pneg %p124
    %p131 = scmp.eq.s32.totalorder %s10, 1
    %p132 = por %p130, %p131
    %p133 = scmp.ne.s32.totalorder %s125, %s128
    %p134 = scmp.eq.s32.totalorder %s10, 0
    %p135 = por %p133, %p134
    %p136 = scmp.ne.s32.totalorder %s125, %s128
    %p137 = scmp.eq.s32.totalorder %s15, 1
    %p138 = por %p136, %p137
    %p139 = scmp.ne.s32.totalorder %s128, %s129
    %p140 = scmp.eq.s32.totalorder %s15, 0
    %p141 = por %p139, %p140
    %p142 = scmp.ne.s32.totalorder %s128, %s129
    %p143 = scmp.eq.s32.totalorder %s16, 1
    %p144 = por %p142, %p143
    %p146 = scmp.ne.s32.totalorder %s129, %s145
    %p147 = scmp.eq.s32.totalorder %s16, 0
    %p148 = por %p146, %p147
    %p149 = scmp.le.s32.totalorder 1, %s10
    %p150 = scmp.lt.s32.totalorder %s10, 3
    %p151 = pnand %p149, %p150
    %p152 = pneg %p151
    // Predicated region
    $region9: #{vision_clue_merge.1} parent=5 // pred_check
      _
    $region10: #{vision_clue_merge.1} parent=5 // pred_check_branch
      %154 = sbr.rel (%p151) target = $region12
    $region11: #{vision_clue_merge.1} parent=5 // pred_region
      %s155 = ssub.s32 %s10, 1
      // Predicated region
      $region13: #{vision_clue_merge.1} parent=11 // pred_check
        %p156 = pneg %p71
      $region14: #{vision_clue_merge.1} parent=11 // pred_check_branch
        %158 = sbr.rel (%p156) target = $region16
      $region15: #{vision_clue_merge.1} parent=11 // pred_region
        _
      $region16: #{vision_clue_merge.1} parent=11 // pred_fallthru
        _
      // Predicated region
      $region17: #{vision_clue_merge.1} parent=11 // pred_check
        %p159 = pneg %p92
      $region18: #{vision_clue_merge.1} parent=11 // pred_check_branch
        %161 = sbr.rel (%p159) target = $region20
      $region19: #{vision_clue_merge.1} parent=11 // pred_region
        _
      $region20: #{vision_clue_merge.1} parent=11 // pred_fallthru
        _
      // Predicated region
      $region21: #{vision_clue_merge.1} parent=11 // pred_check
        %p162 = pneg %p113
      $region22: #{vision_clue_merge.1} parent=11 // pred_check_branch
        %164 = sbr.rel (%p162) target = $region24
      $region23: #{vision_clue_merge.1} parent=11 // pred_region
        _
      $region24: #{vision_clue_merge.1} parent=11 // pred_fallthru
        _
    $region12: #{vision_clue_merge.1} parent=5 // pred_fallthru
      _
    %p165 = scmp.lt.s32.totalorder %s10, 2
    // Predicated region
    $region25: #{vision_clue_merge.1} parent=5 // pred_check
      %p166 = pneg %p165
    $region26: #{vision_clue_merge.1} parent=5 // pred_check_branch
      %168 = sbr.rel (%p166) target = $region28
    $region27: #{vision_clue_merge.1} parent=5 // pred_region
      // Predicated region
      $region29: #{vision_clue_merge.1} parent=27 // pred_check
        %p169 = pneg %p44
      $region30: #{vision_clue_merge.1} parent=27 // pred_check_branch
        %171 = sbr.rel (%p169) target = $region32
      $region31: #{vision_clue_merge.1} parent=27 // pred_region
        %p172 = scmp.lt.s32.totalorder %s17, 1
        %s173 = scalar_select %p172, %s17, 1
        %p174 = scmp.lt.s32.totalorder %s18, 0
        %s175 = scalar_select %p174, %s18, 0
        %s176 = smul.addr %s173, 2
        %s177 = sadd.s32 %s175, %s176
        %s178 = smul.addr %s177, 4
        %s179 = scalar_lea.vmem %s0, %s178
      $region32: #{vision_clue_merge.1} parent=27 // pred_fallthru
        _
    $region28: #{vision_clue_merge.1} parent=5 // pred_fallthru
      _
    %p180 = scmp.le.s32.totalorder 1, %s10
    %p181 = scmp.lt.s32.totalorder %s10, 3
    %p182 = pnand %p180, %p181
    %p183 = pneg %p182
    // Predicated region
    $region33: #{vision_clue_merge.1} parent=5 // pred_check
      _
    $region34: #{vision_clue_merge.1} parent=5 // pred_check_branch
      %185 = sbr.rel (%p182) target = $region36
    $region35: #{vision_clue_merge.1} parent=5 // pred_region
      %s186 = ssub.s32 %s10, 1
      %p187 = scmp.lt.s32.totalorder %s19, 1
      %s188 = scalar_select %p187, %s19, 1
      %p189 = scmp.lt.s32.totalorder %s20, 0
      %s190 = scalar_select %p189, %s20, 0
      %s191 = smul.addr %s188, 2
      %s192 = sadd.s32 %s190, %s191
      %s193 = smul.addr %s192, 4
      %s194 = scalar_lea.vmem %s0, %s193
      %p195 = pneg %p50
      %p196 = pneg %p47
      %p197 = pneg %p71
      %p198 = pneg %p68
      %p199 = pneg %p92
      %p200 = pneg %p89
      %p201 = pneg %p113
      %p202 = pneg %p110
      %p203 = pneg %p141
      %p204 = pneg %p138
      %p205 = scmp.lt.s32.totalorder %s19, 1
      %s206 = scalar_select %p205, %s19, 1
      %p207 = scmp.lt.s32.totalorder %s20, 0
      %s208 = scalar_select %p207, %s20, 0
      %s209 = sadd.s32 %s208, %s206
      %s210 = smul.addr %s209, 4
      %s211 = scalar_lea.vmem %s4, %s210
      %p212 = scmp.lt.s32.totalorder %s19, 1
      %s213 = scalar_select %p212, %s19, 1
      %p214 = scmp.lt.s32.totalorder %s20, 0
      %s215 = scalar_select %p214, %s20, 0
      %s216 = smul.addr %s213, 2
      %s217 = sadd.s32 %s215, %s216
      %s218 = smul.addr %s217, 4
      %s219 = scalar_lea.vmem %s0, %s218
      %p220 = scmp.lt.s32.totalorder %s19, 1
      %s221 = scalar_select %p220, %s19, 1
      %p222 = scmp.lt.s32.totalorder %s20, 0
      %s223 = scalar_select %p222, %s20, 0
      %s224 = sadd.s32 %s223, %s221
      %s225 = smul.addr %s224, 4
      %s226 = scalar_lea.vmem %s4, %s225
      %v228 = vld [vmem:[%s1] sm:$0xf]
      %v229 = vld [vmem:[%s219] sm:$0xf]
      %v230 = vld [vmem:[%s219 + $0x4] sm:$0xf]
      %v233 = vunpack.c.l.b16 %v229
      %v234 = vunpack.c.l.b16 %v230
      %v235 = vpack.c.b16 %v234, %v233
      %vm237 = vcmask 130048
      %v239 = vsel %vm237, %v228, 0
      %241 = vmatprep.subr.bf16.mxu0 0
      %242 = vmatpush1.bf16.msra.mxu0 %v235
      %243 = vmatprep.subr.bf16.mxu0 0
      %244 = vmatpush1.bf16.msra.mxu0 0
      %245 = vmatprep.subr.bf16.mxu0 0
      %246 = vmatpush1.bf16.msra.mxu0 0
      %247 = vmatprep.subr.bf16.mxu0 0
      %248 = vmatpush1.bf16.msra.mxu0 0
      %249 = vmatprep.subr.bf16.mxu0 0
      %250 = vmatpush1.bf16.msra.mxu0 0
      %251 = vmatprep.subr.bf16.mxu0 0
      %252 = vmatpush1.bf16.msra.mxu0 0
      %253 = vmatprep.subr.bf16.mxu0 0
      %254 = vmatpush1.bf16.msra.mxu0 0
      %255 = vmatprep.subr.bf16.mxu0 0
      %256 = vmatpush1.bf16.msra.mxu0 0
      %257 = vmatprep.subr.bf16.mxu0 0
      %258 = vmatpush1.bf16.msra.mxu0 0
      %259 = vmatprep.subr.bf16.mxu0 0
      %260 = vmatpush1.bf16.msra.mxu0 0
      %261 = vmatprep.subr.bf16.mxu0 0
      %262 = vmatpush1.bf16.msra.mxu0 0
      %263 = vmatprep.subr.bf16.mxu0 0
      %264 = vmatpush1.bf16.msra.mxu0 0
      %265 = vmatprep.subr.bf16.mxu0 0
      %266 = vmatpush1.bf16.msra.mxu0 0
      %267 = vmatprep.subr.bf16.mxu0 0
      %268 = vmatpush1.bf16.msra.mxu0 0
      %269 = vmatprep.subr.bf16.mxu0 0
      %270 = vmatpush1.bf16.msra.mxu0 0
      %271 = vmatprep.subr.bf16.mxu0 0
      %272 = vmatpush1.bf16.msra.mxu0 0
      %273 = vmatprep.mubr.bf16.mxu0 0
      %274 = vmatmul.mubr.bf16.gmra.mrb[0].mxu0 %v239
      %v275 = vpop.f32.mrb[0].mxu0
      %v276 = vadd.f32 0.0, %v275
      %v277 = vpop.f32.mrb[0].mxu0
      %v278 = vpop.f32.mrb[0].mxu0
      %v279 = vpop.f32.mrb[0].mxu0
      %280 = vdwg.mxu0
      %v281 = vld [vmem:[%s2] sm:$0xff]
      %283 = vset.pattern.permute.xlu0 0
      %284 = vperm.xlu0 %283, %v281
      %v285 = vpop.permute.xlu0 %284
      %v287 = vmul.f32 %v276, %v285
      %v288 = vld [vmem:[%s3] sm:$0xff]
      %290 = vset.pattern.permute.xlu0 0
      %291 = vperm.xlu0 %290, %v288
      %v292 = vpop.permute.xlu0 %291
      %v294 = vadd.f32 %v287, %v292
      %v295 = vsub.f32 0.0, %v294
      %v296 = vmul.f32 %v295, 1.442695
      %v297 = vpow.pop %v296
      %v298 = vadd.f32 %v297, 1.0
      %v299 = vrcp.pop %v298
      %v300 = vmul.f32 %v294, %v299
      %v301 = vpack.c.bf16 %v300, %v300
      %vm302 = vcmask 519168
      %303 = vst.msk [vmem:[%s226] sm:$0xf] %vm302, %v301
      %p304 = scmp.lt.s32.totalorder %s19, 1
      %s305 = scalar_select %p304, %s19, 1
      %p306 = scmp.lt.s32.totalorder %s20, 0
      %s307 = scalar_select %p306, %s20, 0
      %s308 = sadd.s32 %s307, %s305
      %s309 = smul.addr %s308, 4
      %s310 = scalar_lea.vmem %s4, %s309
      // Predicated region
      $region37: #{vision_clue_merge.1} parent=35 // pred_check
        %p311 = pneg %p138
      $region38: #{vision_clue_merge.1} parent=35 // pred_check_branch
        %313 = sbr.rel (%p311) target = $region40
      $region39: #{vision_clue_merge.1} parent=35 // pred_region
        _
      $region40: #{vision_clue_merge.1} parent=35 // pred_fallthru
        _
    $region36: #{vision_clue_merge.1} parent=5 // pred_fallthru
      _
    %p314 = scmp.le.s32.totalorder 2, %s10
    // Predicated region
    $region41: #{vision_clue_merge.1} parent=5 // pred_check
      %p315 = pneg %p314
    $region42: #{vision_clue_merge.1} parent=5 // pred_check_branch
      %317 = sbr.rel (%p315) target = $region44
    $region43: #{vision_clue_merge.1} parent=5 // pred_region
      %s318 = ssub.s32 %s10, 2
      // Predicated region
      $region45: #{vision_clue_merge.1} parent=43 // pred_check
        %p319 = pneg %p144
      $region46: #{vision_clue_merge.1} parent=43 // pred_check_branch
        %321 = sbr.rel (%p319) target = $region48
      $region47: #{vision_clue_merge.1} parent=43 // pred_region
        %p322 = scmp.lt.s32.totalorder %s21, 1
        %s323 = scalar_select %p322, %s21, 1
        %p324 = scmp.lt.s32.totalorder %s22, 0
        %s325 = scalar_select %p324, %s22, 0
        %s326 = sadd.s32 %s325, %s323
        %s327 = smul.addr %s326, 4
        %s328 = scalar_lea.vmem %s4, %s327
      $region48: #{vision_clue_merge.1} parent=43 // pred_fallthru
        _
    $region44: #{vision_clue_merge.1} parent=5 // pred_fallthru
      _
  $region6: #{vision_clue_merge.1} parent=0 // loop_footer
    %s14 = sadd.s32 1, %s10
  $region7: #{vision_clue_merge.1} parent=0 // loop_footer_branch
    %9 = sbr.rel target = $region3
  $region8: #{vision_clue_merge.1} parent=0 // loop_exit
    _

</llo_original>
